<compile_context>
chip_gen: v6e
topology: v6e:2x2x1
jax: 0.10.0
libtpu: 0.0.40
codegen_flags: <defaults>
</compile_context>

<pallas_src>
import math

import jax
import jax.numpy as jnp
from jax.experimental import pallas as pl
from jax.experimental.pallas import tpu as pltpu


def _round_up(x, m):
    return (x + m - 1) // m * m


def _vmem_capacity_bytes():
    try:
        return int(pltpu.get_tpu_info().vmem_capacity_bytes)
    except Exception:
        return 64 * 1024 * 1024  # v7x-sized conservative fallback


def _pick_lane_tile(n_lanes, cap, min_steps=1):
    """Largest multiple-of-128 lane tile <= cap; prefer >= min_steps grid steps."""
    full = _round_up(max(n_lanes, 1), 128)
    tile = max(128, min((cap // 128) * 128, full))
    while tile > 128 and pl.cdiv(n_lanes, tile) < min_steps:
        tile -= 128
    return tile


# --------------------------------------------------------------------------
# use_conv=True : Conv2d(C, Cout, 3, stride=2, padding=1) as im2col matmul
# --------------------------------------------------------------------------
def _conv_kernel_wx(xcol_ref, w_ref, b_ref, out_ref):
    # out[Cout, tn] = W[Cout, Kp] @ Xcol[Kp, tn]   (bf16 MXU, f32 accumulate)
    acc = jnp.dot(w_ref[...], xcol_ref[...], preferred_element_type=jnp.float32)
    out_ref[...] = (acc + b_ref[...]).astype(out_ref.dtype)


def _conv_kernel_xw(xcol_ref, w_ref, b_ref, out_ref):
    # out[tn, Cout] = XcolT[tn, Kp] @ W^T[Kp, Cout]  (row-streaming, Cout >= 128)
    acc = jnp.dot(xcol_ref[...], w_ref[...], preferred_element_type=jnp.float32)
    out_ref[...] = (acc + b_ref[...]).astype(out_ref.dtype)


def downsample_conv(x, weight, bias, *, stride=2, padding=1, lane_tile=2048):
    """x: [B, C, H, W]; weight: [Cout, C, 3, 3]; bias: [Cout]."""
    B, C, H, W = x.shape
    Cout, Cin, KH, KW = weight.shape
    assert Cin == C
    Ho = (H + 2 * padding - KH) // stride + 1
    Wo = (W + 2 * padding - KW) // stride + 1
    T = Ho * Wo
    K = C * KH * KW
    Kp = _round_up(K, 16)  # bf16-sublane-friendly contraction dim (zero pad exact)

    # Flip the matmul orientation when Cout is MXU-wide: stream im2col rows
    # against a stationary weight so the weight push amortises over tn rows.
    flip = Cout >= 128

    # ---- im2col in plain JAX (layout plumbing, not compute) -----------------
    xp = jnp.pad(x, ((0, 0), (0, 0), (padding, padding), (padding, padding)))
    taps = [xp[:, :, ky:ky + stride * (Ho - 1) + 1:stride,
                     kx:kx + stride * (Wo - 1) + 1:stride]
            for ky in range(KH) for kx in range(KW)]          # 9 x [B, C, Ho, Wo]
    if not flip:
        # [B, C, 9, Ho, Wo] -> [B, K, T]   (no cross-batch HBM transpose)
        xcol = jnp.stack(taps, axis=2).reshape(B, K, T).astype(jnp.bfloat16)
        xcol = jnp.pad(xcol, ((0, 0), (0, Kp - K), (0, 0)))
        w2d = jnp.pad(weight.reshape(Cout, K).astype(jnp.bfloat16),
                      ((0, 0), (0, Kp - K)))
        b2d = bias.reshape(Cout, 1).astype(jnp.float32)
    else:
        # [B, Ho, Wo, C, 9] -> [B, T, K]
        xcol = jnp.stack([jnp.transpose(t, (0, 2, 3, 1)) for t in taps],
                         axis=-1).reshape(B, T, K).astype(jnp.bfloat16)
        xcol = jnp.pad(xcol, ((0, 0), (0, 0), (0, Kp - K)))
        w2d = jnp.pad(weight.reshape(Cout, K).T.astype(jnp.bfloat16),
                      ((0, Kp - K), (0, 0)))                   # [Kp, Cout]
        b2d = bias.reshape(1, Cout).astype(jnp.float32)

    # ---- VMEM-aware lane-tile selection --------------------------------------
    cap = _vmem_capacity_bytes()
    budget = int(cap * 0.75)          # honest sizing budget (fits v7x's 64 MiB)
    vmem_limit = int(cap * 0.85)      # compiler limit with extra slack, < physical
    resident = Cout * Kp * 2 + Cout * 4 + (2 << 20)   # 1-buffered weight + bias + slack
    per_lane = 2 * (Kp * 2) + 2 * (Cout * 4)          # 2-buffered xcol + out tiles
    tn_cap = min(lane_tile,
                 max(128, (max(budget - resident, 0) // per_lane) // 128 * 128))
    tn = _pick_lane_tile(T, tn_cap, min_steps=2 if B == 1 else 1)
    n_steps = pl.cdiv(T, tn)
    grid = (B, n_steps)

    # Optional third buffer for the streamed im2col tile (hides DMA latency on
    # v5e/v6e; the VMEM-derived budget naturally gates it off when tight).
    triple = resident + 3 * Kp * tn * 2 + 2 * Cout * tn * 4 <= budget

    cost = pl.CostEstimate(
        flops=2 * B * n_steps * tn * Kp * Cout,
        transcendentals=0,
        bytes_accessed=(xcol.size * 2 + w2d.size * 2 + bias.size * 4
                        + B * T * Cout * 4))

    def _build(use_buffer_hints):
        wm = dict(pipeline_mode=pl.Buffered(1)) if use_buffer_hints else {}
        xm = (dict(pipeline_mode=pl.Buffered(3))
              if (use_buffer_hints and triple) else {})
        if not flip:
            in_specs = [
                pl.BlockSpec((None, Kp, tn), lambda b, n: (b, 0, n), **xm),
                pl.BlockSpec((Cout, Kp), lambda b, n: (0, 0), **wm),
                pl.BlockSpec((Cout, 1), lambda b, n: (0, 0), **wm),
            ]
            out_spec = pl.BlockSpec((None, Cout, tn), lambda b, n: (b, 0, n))
            out_shape = jax.ShapeDtypeStruct((B, Cout, T), jnp.float32)
            kernel = _conv_kernel_wx
        else:
            in_specs = [
                pl.BlockSpec((None, tn, Kp), lambda b, n: (b, n, 0), **xm),
                pl.BlockSpec((Kp, Cout), lambda b, n: (0, 0), **wm),
                pl.BlockSpec((1, Cout), lambda b, n: (0, 0), **wm),
            ]
            out_spec = pl.BlockSpec((None, tn, Cout), lambda b, n: (b, n, 0))
            out_shape = jax.ShapeDtypeStruct((B, T, Cout), jnp.float32)
            kernel = _conv_kernel_xw
        return kernel, in_specs, out_spec, out_shape

    def _run(use_buffer_hints):
        kernel, in_specs, out_spec, out_shape = _build(use_buffer_hints)
        return pl.pallas_call(
            kernel,
            out_shape=out_shape,
            grid_spec=pltpu.PrefetchScalarGridSpec(
                num_scalar_prefetch=0,
                grid=grid,
                in_specs=in_specs,
                out_specs=out_spec,
            ),
            compiler_params=pltpu.CompilerParams(
                dimension_semantics=("parallel", "parallel"),
                vmem_limit_bytes=vmem_limit),
            cost_estimate=cost,
        )(xcol, w2d, b2d)

    try:
        out = _run(True)
    except Exception:
        # Same math without the single-/triple-buffer hints (robust fallback).
        out = _run(False)

    if not flip:
        return out.reshape(B, Cout, Ho, Wo).astype(x.dtype)
    return jnp.transpose(out, (0, 2, 1)).reshape(B, Cout, Ho, Wo).astype(x.dtype)


# --------------------------------------------------------------------------
# use_conv=False : AvgPool2d(kernel_size=2, stride=2)
# --------------------------------------------------------------------------
def _avgpool_kernel(taps_ref, out_ref):
    s = jnp.sum(taps_ref[...].astype(jnp.float32), axis=0)   # (8, tn)
    out_ref[...] = s * 0.25


def downsample_avgpool(x, *, lane_tile=2048):
    """x: [B, C, H, W] -> [B, C, H//2, W//2] (2x2 average pool, stride 2)."""
    B, C, H, W = x.shape
    Ho, Wo = H // 2, W // 2
    N = B * C * Ho * Wo

    # 4 strided taps packed into a sublane- AND lane-dense [4, 8, N/8] layout so
    # every vld/vst uses full vregs (8 sublanes x 128 lanes) on the store path.
    taps = jnp.stack([x[:, :, dy:2 * Ho:2, dx:2 * Wo:2].reshape(-1)
                      for dy in range(2) for dx in range(2)], axis=0)   # [4, N]
    Np = _round_up(N, 8)
    M = Np // 8
    taps = jnp.pad(taps, ((0, 0), (0, Np - N))).reshape(4, 8, M)

    tn = _pick_lane_tile(M, lane_tile, min_steps=2)
    grid = (pl.cdiv(M, tn),)

    def _run(fuse):
        return pl.pallas_call(
            _avgpool_kernel,
            out_shape=jax.ShapeDtypeStruct((8, M), jnp.float32),
            grid_spec=pltpu.PrefetchScalarGridSpec(
                num_scalar_prefetch=0,
                grid=grid,
                in_specs=[pl.BlockSpec((4, 8, tn), lambda n: (0, 0, n))],
                out_specs=pl.BlockSpec((8, tn), lambda n: (0, n)),
            ),
            compiler_params=pltpu.CompilerParams(
                dimension_semantics=("parallel",),
                allow_input_fusion=[True] if fuse else None),
        )(taps)

    try:
        # Let XLA fuse the tap extraction into the call (no HBM taps array).
        out = _run(True)
    except Exception:
        out = _run(False)

    return out.reshape(-1)[:N].reshape(B, C, Ho, Wo).astype(x.dtype)


# --------------------------------------------------------------------------
# Downsample.forward
# --------------------------------------------------------------------------
def downsample(x, *, use_conv, weight=None, bias=None, padding=1, dims=2):
    # TODO(synk): dims=3 (stride (1,2,2)) and dims=1 variants of the module are
    # not implemented; only the standard 2D path is covered here.
    assert dims == 2
    assert x.shape[1] == (weight.shape[1] if use_conv else x.shape[1])
    if use_conv:
        return downsample_conv(x, weight, bias, stride=2, padding=padding)
    return downsample_avgpool(x)


if __name__ == "__main__":
    key = jax.random.PRNGKey(0)
    kx, kw, kb, kx2, kw2, kb2 = jax.random.split(key, 6)

    B, H, W = 2, 16, 16

    # ---- use_conv=True, Cout < 128 (weight @ im2col orientation) ----------
    C, Cout = 16, 32
    x = jax.random.normal(kx, (B, C, H, W), dtype=jnp.float32)
    bound = 1.0 / math.sqrt(C * 9)
    weight = jax.random.uniform(kw, (Cout, C, 3, 3), jnp.float32, -bound, bound)
    bias = jax.random.uniform(kb, (Cout,), jnp.float32, -bound, bound)

    out_conv = jax.block_until_ready(
        downsample(x, use_conv=True, weight=weight, bias=bias, padding=1))
    ref_conv = jax.lax.conv_general_dilated(
        x, weight, window_strides=(2, 2), padding=((1, 1), (1, 1)),
        dimension_numbers=("NCHW", "OIHW", "NCHW")) + bias[None, :, None, None]
    assert out_conv.shape == (B, Cout, H // 2, W // 2)
    err = float(jnp.max(jnp.abs(out_conv - ref_conv)))
    # bf16 MXU operands (f32 accumulation) -> slightly looser tolerance.
    assert jnp.allclose(out_conv, ref_conv, rtol=2e-2, atol=2e-2), err

    # ---- use_conv=True, Cout >= 128 (row-streaming orientation) -----------
    C2, Cout2 = 8, 128
    x2 = jax.random.normal(kx2, (B, C2, H, W), dtype=jnp.float32)
    bound2 = 1.0 / math.sqrt(C2 * 9)
    weight2 = jax.random.uniform(kw2, (Cout2, C2, 3, 3), jnp.float32,
                                 -bound2, bound2)
    bias2 = jax.random.uniform(kb2, (Cout2,), jnp.float32, -bound2, bound2)
    out_conv2 = jax.block_until_ready(
        downsample(x2, use_conv=True, weight=weight2, bias=bias2, padding=1))
    ref_conv2 = jax.lax.conv_general_dilated(
        x2, weight2, window_strides=(2, 2), padding=((1, 1), (1, 1)),
        dimension_numbers=("NCHW", "OIHW", "NCHW")) + bias2[None, :, None, None]
    assert out_conv2.shape == (B, Cout2, H // 2, W // 2)
    err2 = float(jnp.max(jnp.abs(out_conv2 - ref_conv2)))
    assert jnp.allclose(out_conv2, ref_conv2, rtol=2e-2, atol=2e-2), err2

    # ---- use_conv=False (AvgPool2d(2, 2)) ----------------------------------
    out_pool = jax.block_until_ready(downsample(x, use_conv=False))
    ref_pool = x.reshape(B, C, H // 2, 2, W // 2, 2).mean(axis=(3, 5))
    assert out_pool.shape == (B, C, H // 2, W // 2)
    assert jnp.allclose(out_pool, ref_pool, rtol=1e-5, atol=1e-5)

    print("KERNEL_OK")
</pallas_src>

<mosaic_0001>
module attributes {stable_mosaic.version = 11 : i64} {
  func.func @_conv_kernel_wx(%arg0: i32, %arg1: i32, %arg2: memref<1x144x128xbf16, #tpu.memory_space<vmem>>, %arg3: memref<32x144xbf16, #tpu.memory_space<vmem>>, %arg4: memref<32x1xf32, #tpu.memory_space<vmem>>, %arg5: memref<1x32x128xf32, #tpu.memory_space<vmem>>) attributes {dimension_semantics = [#tpu.dimension_semantics<parallel>, #tpu.dimension_semantics<parallel>], iteration_bounds = array<i64: 2, 1>, scalar_prefetch = 0 : i64, scratch_operands = 0 : i64, tpu.core_type = #tpu.core_type<tc>, window_params = [{transform_indices = @transform_0, window_bounds = array<i64: 1, 144, 128>}, {pipeline_mode = #tpu.pipeline_mode<synchronous>, transform_indices = @transform_1, window_bounds = array<i64: 32, 144>}, {pipeline_mode = #tpu.pipeline_mode<synchronous>, transform_indices = @transform_2, window_bounds = array<i64: 32, 1>}, {transform_indices = @transform_3, window_bounds = array<i64: 1, 32, 128>}]} {
    %c0 = arith.constant 0 : index
    %c0_0 = arith.constant 0 : index
    %0 = vector.load %arg3[%c0, %c0_0] : memref<32x144xbf16, #tpu.memory_space<vmem>>, vector<32x144xbf16>
    %c0_1 = arith.constant 0 : index
    %c0_2 = arith.constant 0 : index
    %c0_3 = arith.constant 0 : index
    %1 = vector.load %arg2[%c0_1, %c0_2, %c0_3] : memref<1x144x128xbf16, #tpu.memory_space<vmem>>, vector<1x144x128xbf16>
    %2 = vector.shape_cast %1 : vector<1x144x128xbf16> to vector<144x128xbf16>
    %cst = arith.constant dense<0.000000e+00> : vector<32x128xf32>
    %3 = tpu.matmul %0, %2, %cst {dimension_numbers = #tpu.dot_dimension_numbers<[1], [0], [0], [1], [0, 0, 1, 1], [], []>} : vector<32x144xbf16>, vector<144x128xbf16>, vector<32x128xf32> -> vector<32x128xf32>
    %c0_4 = arith.constant 0 : index
    %c0_5 = arith.constant 0 : index
    %4 = vector.load %arg4[%c0_4, %c0_5] : memref<32x1xf32, #tpu.memory_space<vmem>>, vector<32x1xf32>
    %5 = vector.broadcast %4 : vector<32x1xf32> to vector<32x128xf32>
    %6 = arith.addf %3, %5 : vector<32x128xf32>
    %c0_6 = arith.constant 0 : index
    %c0_7 = arith.constant 0 : index
    %c0_8 = arith.constant 0 : index
    %7 = vector.load %arg5[%c0_6, %c0_7, %c0_8] : memref<1x32x128xf32, #tpu.memory_space<vmem>>, vector<1x32x128xf32>
    %8 = vector.shape_cast %7 : vector<1x32x128xf32> to vector<32x128xf32>
    %9 = vector.shape_cast %6 : vector<32x128xf32> to vector<1x32x128xf32>
    tpu.vector_store %arg5[%c0_6, %c0_7, %c0_8], %9 {strides = array<i32>} : memref<1x32x128xf32, #tpu.memory_space<vmem>>, vector<1x32x128xf32>,
    return
  }
  func.func @transform_0(%arg0: i32, %arg1: i32) -> (i32, i32, i32) {
    %c0_i32 = arith.constant 0 : i32
    %c0_i32_0 = arith.constant 0 : i32
    return %arg0, %c0_i32, %arg1 : i32, i32, i32
  }
  func.func @transform_1(%arg0: i32, %arg1: i32) -> (i32, i32) {
    %c0_i32 = arith.constant 0 : i32
    %c0_i32_0 = arith.constant 0 : i32
    %c0_i32_1 = arith.constant 0 : i32
    return %c0_i32, %c0_i32_0 : i32, i32
  }
  func.func @transform_2(%arg0: i32, %arg1: i32) -> (i32, i32) {
    %c0_i32 = arith.constant 0 : i32
    %c0_i32_0 = arith.constant 0 : i32
    %c0_i32_1 = arith.constant 0 : i32
    return %c0_i32, %c0_i32_0 : i32, i32
  }
  func.func @transform_3(%arg0: i32, %arg1: i32) -> (i32, i32, i32) {
    %c0_i32 = arith.constant 0 : i32
    %c0_i32_0 = arith.constant 0 : i32
    return %arg0, %c0_i32, %arg1 : i32, i32, i32
  }
}

</mosaic_0001>

<llo_original>
// kernel: tpu_custom_call.1
$region0: #{tpu_custom_call.1}
  #allocation0 [shape = 'u32[]', space=smem, size = 0x4, offset = 0x4, fixed_abs, tag = 'smem constant byte address 0x4 - core index']
  #allocation1 [shape = 'u32[144,128]{1,0:T(1,128)}', space=vmem, size = 0x12000, scoped, tag = 'internal scratch']
  %s0 = inlined_call_operand.vmem [shape: bf16[2,144,64], index: 0, kind: input, shape index: {}]
  %s1 = inlined_call_operand.vmem [shape: bf16[32,144], index: 1, kind: input, shape index: {}]
  %s2 = inlined_call_operand.vmem [shape: f32[32,1], index: 2, kind: input, shape index: {}]
  %s3 = inlined_call_operand.hbm [shape: f32[2,32,64], index: 3, kind: output, shape index: {}]
  %s4 = sld [smem:[#allocation0]]
  $region45: #{tpu_custom_call.1} parent=0
    _
  %s6 = ssub.s32 1, %s4
  %s7 = scalar_select 0, %s6, %s4
  $region1: #{tpu_custom_call.1} parent=0
    #allocation2 [shape = 'u8[32768]{0}', space=vmem, size = 0x8000, scoped, tag = 'output window, operand 0']
    #allocation3 [shape = 's32[2]{0}', space=sflag, size = 0x8, scoped, tag = 'scoped memory for tpu_custom_call.1']
    %8 = vsyncpa [#allocation3], 0
    %s9 = scalar_lea.sflag [#allocation3], 1
    %10 = vsyncpa %s9, 0
    loop: start=0, step=1, limit=4
    $region2: #{tpu_custom_call.1} parent=1 // loop_pre_header
      _
    $region3: #{tpu_custom_call.1} parent=1 // loop_header
      %s12 = sphi 0, %s16
      %p13 = scmp.ge.s32.totalorder %s12, 4
      %s19 = sphi 0, %s31
      %s20 = sphi 0, %s27
      %s21 = sphi 0, %s19
      %s22 = sphi 0, %s20
      %s23 = sphi 0, %s21
      %s24 = sphi 0, %s22
      %s36 = sphi 0, %s38
      %s39 = sphi 0, %s36
      %s40 = sphi 0, %s39
      %s56 = sphi 0, %s40
      %s60 = sphi 0, %s60
      %s62 = sphi 0, %s60
      %s63 = sphi 0, %s62
      %s77 = sphi 0, %s63
      %s81 = sphi 0, %s81
      %s83 = sphi 0, %s81
      %s84 = sphi 0, %s83
      %s98 = sphi 0, %s84
      %s106 = sphi 0, %s108
      %s109 = sphi 0, %s106
      %s110 = sphi 0, %s109
      %s126 = sphi 0, %s110
    $region4: #{tpu_custom_call.1} parent=1 // loop_header_branch
      %15 = sbr.rel (%p13) target = $region8
    $region5: #{tpu_custom_call.1} parent=1 // loop_body
      %s17 = ssub.s32 %s12, 1
      %s18 = ssub.s32 %s12, 2
      %s25 = sadd.s32 1, %s20
      %p26 = scmp.ge.s32.totalorder %s25, 1
      %s27 = scalar_select %p26, 0, %s25
      %s28 = sadd.s32 1, %s19
      %s29 = scalar_select %p26, %s28, %s19
      %p30 = scmp.ge.s32.totalorder %s29, 2
      %s31 = scalar_select %p30, 0, %s29
      %s32 = ssub.s32 %s19, %s31
      %s33 = ssub.s32 %s20, %s27
      %s34 = sor.u32 %s32, %s33
      %p35 = scmp.eq.s32.totalorder %s34, 0
      %s37 = sadd.s32 %s36, 1
      %s38 = scalar_select %p35, %s36, %s37
      %p41 = pneg %p35
      %p42 = scmp.eq.s32.totalorder %s12, 1
      %p43 = por %p41, %p42
      %p44 = scmp.ne.s32.totalorder %s36, %s39
      %p45 = scmp.eq.s32.totalorder %s12, 0
      %p46 = por %p44, %p45
      %p47 = scmp.ne.s32.totalorder %s36, %s39
      %p48 = scmp.eq.s32.totalorder %s17, 1
      %p49 = por %p47, %p48
      %p50 = scmp.ne.s32.totalorder %s39, %s40
      %p51 = scmp.eq.s32.totalorder %s17, 0
      %p52 = por %p50, %p51
      %p53 = scmp.ne.s32.totalorder %s39, %s40
      %p54 = scmp.eq.s32.totalorder %s18, 1
      %p55 = por %p53, %p54
      %p57 = scmp.ne.s32.totalorder %s40, %s56
      %p58 = scmp.eq.s32.totalorder %s18, 0
      %p59 = por %p57, %p58
      %s61 = sadd.s32 %s60, 1
      %p64 = scmp.eq.s32.totalorder %s12, 1
      %p65 = scmp.ne.s32.totalorder %s60, %s62
      %p66 = scmp.eq.s32.totalorder %s12, 0
      %p67 = por %p65, %p66
      %p68 = scmp.ne.s32.totalorder %s60, %s62
      %p69 = scmp.eq.s32.totalorder %s17, 1
      %p70 = por %p68, %p69
      %p71 = scmp.ne.s32.totalorder %s62, %s63
      %p72 = scmp.eq.s32.totalorder %s17, 0
      %p73 = por %p71, %p72
      %p74 = scmp.ne.s32.totalorder %s62, %s63
      %p75 = scmp.eq.s32.totalorder %s18, 1
      %p76 = por %p74, %p75
      %p78 = scmp.ne.s32.totalorder %s63, %s77
      %p79 = scmp.eq.s32.totalorder %s18, 0
      %p80 = por %p78, %p79
      %s82 = sadd.s32 %s81, 1
      %p85 = scmp.eq.s32.totalorder %s12, 1
      %p86 = scmp.ne.s32.totalorder %s81, %s83
      %p87 = scmp.eq.s32.totalorder %s12, 0
      %p88 = por %p86, %p87
      %p89 = scmp.ne.s32.totalorder %s81, %s83
      %p90 = scmp.eq.s32.totalorder %s17, 1
      %p91 = por %p89, %p90
      %p92 = scmp.ne.s32.totalorder %s83, %s84
      %p93 = scmp.eq.s32.totalorder %s17, 0
      %p94 = por %p92, %p93
      %p95 = scmp.ne.s32.totalorder %s83, %s84
      %p96 = scmp.eq.s32.totalorder %s18, 1
      %p97 = por %p95, %p96
      %p99 = scmp.ne.s32.totalorder %s84, %s98
      %p100 = scmp.eq.s32.totalorder %s18, 0
      %p101 = por %p99, %p100
      %s102 = ssub.s32 %s19, %s31
      %s103 = ssub.s32 %s20, %s27
      %s104 = sor.u32 %s102, %s103
      %p105 = scmp.eq.s32.totalorder %s104, 0
      %s107 = sadd.s32 %s106, 1
      %s108 = scalar_select %p105, %s106, %s107
      %p111 = pneg %p105
      %p112 = scmp.eq.s32.totalorder %s12, 1
      %p113 = por %p111, %p112
      %p114 = scmp.ne.s32.totalorder %s106, %s109
      %p115 = scmp.eq.s32.totalorder %s12, 0
      %p116 = por %p114, %p115
      %p117 = scmp.ne.s32.totalorder %s106, %s109
      %p118 = scmp.eq.s32.totalorder %s17, 1
      %p119 = por %p117, %p118
      %p120 = scmp.ne.s32.totalorder %s109, %s110
      %p121 = scmp.eq.s32.totalorder %s17, 0
      %p122 = por %p120, %p121
      %p123 = scmp.ne.s32.totalorder %s109, %s110
      %p124 = scmp.eq.s32.totalorder %s18, 1
      %p125 = por %p123, %p124
      %p127 = scmp.ne.s32.totalorder %s110, %s126
      %p128 = scmp.eq.s32.totalorder %s18, 0
      %p129 = por %p127, %p128
      %p130 = scmp.le.s32.totalorder 1, %s12
      %p131 = scmp.lt.s32.totalorder %s12, 3
      %p132 = pnand %p130, %p131
      %p133 = pneg %p132
      // Predicated region
      $region9: #{tpu_custom_call.1} parent=5 // pred_check
        _
      $region10: #{tpu_custom_call.1} parent=5 // pred_check_branch
        %135 = sbr.rel (%p132) target = $region12
      $region11: #{tpu_custom_call.1} parent=5 // pred_region
        %s136 = ssub.s32 %s12, 1
        // Predicated region
        $region13: #{tpu_custom_call.1} parent=11 // pred_check
          %p137 = pneg %p73
        $region14: #{tpu_custom_call.1} parent=11 // pred_check_branch
          %139 = sbr.rel (%p137) target = $region16
        $region15: #{tpu_custom_call.1} parent=11 // pred_region
          _
        $region16: #{tpu_custom_call.1} parent=11 // pred_fallthru
          _
        // Predicated region
        $region17: #{tpu_custom_call.1} parent=11 // pred_check
          %p140 = pneg %p94
        $region18: #{tpu_custom_call.1} parent=11 // pred_check_branch
          %142 = sbr.rel (%p140) target = $region20
        $region19: #{tpu_custom_call.1} parent=11 // pred_region
          _
        $region20: #{tpu_custom_call.1} parent=11 // pred_fallthru
          _
      $region12: #{tpu_custom_call.1} parent=5 // pred_fallthru
        _
      %p143 = scmp.lt.s32.totalorder %s12, 2
      // Predicated region
      $region21: #{tpu_custom_call.1} parent=5 // pred_check
        %p144 = pneg %p143
      $region22: #{tpu_custom_call.1} parent=5 // pred_check_branch
        %146 = sbr.rel (%p144) target = $region24
      $region23: #{tpu_custom_call.1} parent=5 // pred_region
        // Predicated region
        $region25: #{tpu_custom_call.1} parent=23 // pred_check
          %p147 = pneg %p46
        $region26: #{tpu_custom_call.1} parent=23 // pred_check_branch
          %149 = sbr.rel (%p147) target = $region28
        $region27: #{tpu_custom_call.1} parent=23 // pred_region
          %p150 = scmp.lt.s32.totalorder %s19, 1
          %s151 = scalar_select %p150, %s19, 1
          %p152 = scmp.lt.s32.totalorder %s20, 0
          %s153 = scalar_select %p152, %s20, 0
          %s154 = smul.addr %s151, 18
          %s155 = sadd.s32 %s153, %s154
          %s156 = smul.addr %s155, 4
          %s157 = scalar_lea.vmem %s0, %s156
        $region28: #{tpu_custom_call.1} parent=23 // pred_fallthru
          _
      $region24: #{tpu_custom_call.1} parent=5 // pred_fallthru
        _
      %p158 = scmp.le.s32.totalorder 1, %s12
      %p159 = scmp.lt.s32.totalorder %s12, 3
      %p160 = pnand %p158, %p159
      %p161 = pneg %p160
      // Predicated region
      $region29: #{tpu_custom_call.1} parent=5 // pred_check
        _
      $region30: #{tpu_custom_call.1} parent=5 // pred_check_branch
        %163 = sbr.rel (%p160) target = $region32
      $region31: #{tpu_custom_call.1} parent=5 // pred_region
        %s164 = ssub.s32 %s12, 1
        %p165 = scmp.lt.s32.totalorder %s21, 1
        %s166 = scalar_select %p165, %s21, 1
        %p167 = scmp.lt.s32.totalorder %s22, 0
        %s168 = scalar_select %p167, %s22, 0
        %s169 = smul.addr %s166, 18
        %s170 = sadd.s32 %s168, %s169
        %s171 = smul.addr %s170, 4
        %s172 = scalar_lea.vmem %s0, %s171
        %p173 = pneg %p52
        %p174 = pneg %p49
        %p175 = pneg %p73
        %p176 = pneg %p70
        %p177 = pneg %p94
        %p178 = pneg %p91
        %p179 = pneg %p122
        %p180 = pneg %p119
        %s181 = sand.u32 %s109, 1
        %s182 = scalar_lea.sflag [#allocation3], %s181
        %s183 = sand.u32 %s109, 1
        %s184 = smul.addr %s183, 32
        %s185 = scalar_lea.vmem [#allocation2], %s184
        %p186 = scmp.lt.s32.totalorder %s21, 1
        %s187 = scalar_select %p186, %s21, 1
        %p188 = scmp.lt.s32.totalorder %s22, 0
        %s189 = scalar_select %p188, %s22, 0
        %s190 = smul.addr %s187, 18
        %s191 = sadd.s32 %s189, %s190
        %s192 = smul.addr %s191, 4
        %s193 = scalar_lea.vmem %s0, %s192
        %v195 = vld [vmem:[%s1] sm:$0xff]
        %v196 = vld [vmem:[%s1 + $0x8] sm:$0xff]
        %v197 = vld [vmem:[%s1 + $0x10] sm:$0xff]
        %v198 = vld [vmem:[%s1 + $0x18] sm:$0xff]
        %v199 = vld [vmem:[%s193] sm:$0xf]
        %v200 = vld [vmem:[%s193 + $0x4] sm:$0xf]
        %v201 = vld [vmem:[%s193 + $0x8] sm:$0xf]
        %v202 = vld [vmem:[%s193 + $0xc] sm:$0xf]
        %v203 = vld [vmem:[%s193 + $0x10] sm:$0xf]
        %v204 = vld [vmem:[%s193 + $0x14] sm:$0xf]
        %v205 = vld [vmem:[%s193 + $0x18] sm:$0xf]
        %v206 = vld [vmem:[%s193 + $0x1c] sm:$0xf]
        %v207 = vld [vmem:[%s193 + $0x20] sm:$0xf]
        %v208 = vld [vmem:[%s193 + $0x24] sm:$0xf]
        %v209 = vld [vmem:[%s193 + $0x28] sm:$0xf]
        %v210 = vld [vmem:[%s193 + $0x2c] sm:$0xf]
        %v211 = vld [vmem:[%s193 + $0x30] sm:$0xf]
        %v212 = vld [vmem:[%s193 + $0x34] sm:$0xf]
        %v213 = vld [vmem:[%s193 + $0x38] sm:$0xf]
        %v214 = vld [vmem:[%s193 + $0x3c] sm:$0xf]
        %v215 = vld [vmem:[%s193 + $0x40] sm:$0xf]
        %v216 = vld [vmem:[%s193 + $0x44] sm:$0xf]
        %v217 = vld [vmem:[%s2] sm:$0xff]
        %v218 = vld [vmem:[%s2 + $0x8] sm:$0xff]
        %v219 = vld [vmem:[%s2 + $0x10] sm:$0xff]
        %v220 = vld [vmem:[%s2 + $0x18] sm:$0xff]
        %222 = vset.pattern.permute.xlu0 0
        %223 = vperm.xlu0 %222, %v217
        %v224 = vpop.permute.xlu0 %223
        %227 = vset.pattern.permute.xlu0 0
        %228 = vperm.xlu0 %227, %v218
        %v229 = vpop.permute.xlu0 %228
        %232 = vset.pattern.permute.xlu0 0
        %233 = vperm.xlu0 %232, %v219
        %v234 = vpop.permute.xlu0 %233
        %237 = vset.pattern.permute.xlu0 0
        %238 = vperm.xlu0 %237, %v220
        %v239 = vpop.permute.xlu0 %238
        %v245 = vunpack.c.l.b16 %v195
        %v246 = vunpack.c.h.b16 %v195
        %v247 = vunpack.c.l.b16 %v196
        %v248 = vunpack.c.h.b16 %v196
        %v249 = vunpack.c.l.b16 %v197
        %v250 = vunpack.c.h.b16 %v197
        %v251 = vunpack.c.l.b16 %v198
        %v252 = vunpack.c.h.b16 %v198
        %v253 = vpack.c.b16 %v247, %v245
        %v254 = vpack.c.b16 %v248, %v246
        %v255 = vpack.c.b16 %v251, %v249
        %v256 = vpack.c.b16 %v252, %v250
        %v277 = vunpack.c.l.b16 %v199
        %v278 = vunpack.c.l.b16 %v200
        %v279 = vunpack.c.l.b16 %v201
        %v280 = vunpack.c.l.b16 %v202
        %v281 = vunpack.c.l.b16 %v203
        %v282 = vunpack.c.l.b16 %v204
        %v283 = vunpack.c.l.b16 %v205
        %v284 = vunpack.c.l.b16 %v206
        %v285 = vunpack.c.l.b16 %v207
        %v286 = vunpack.c.l.b16 %v208
        %v287 = vunpack.c.l.b16 %v209
        %v288 = vunpack.c.l.b16 %v210
        %v289 = vunpack.c.l.b16 %v211
        %v290 = vunpack.c.l.b16 %v212
        %v291 = vunpack.c.l.b16 %v213
        %v292 = vunpack.c.l.b16 %v214
        %v293 = vunpack.c.l.b16 %v215
        %v294 = vunpack.c.l.b16 %v216
        %v295 = vpack.c.b16 %v278, %v277
        %v296 = vpack.c.b16 %v280, %v279
        %v297 = vpack.c.b16 %v282, %v281
        %v298 = vpack.c.b16 %v284, %v283
        %v299 = vpack.c.b16 %v286, %v285
        %v300 = vpack.c.b16 %v288, %v287
        %v301 = vpack.c.b16 %v290, %v289
        %v302 = vpack.c.b16 %v292, %v291
        %v303 = vpack.c.b16 %v294, %v293
        %vm313 = vcmask 130048
        %v315 = vsel %vm313, %v254, 0
        %v318 = vsel %vm313, %v256, 0
        %320 = vmatprep.subr.bf16.mxu0 0
        %321 = vmatpush1.bf16.msra.mxu0 %v302
        %322 = vmatprep.subr.bf16.mxu0 0
        %323 = vmatpush1.bf16.msra.mxu0 %v301
        %324 = vmatprep.subr.bf16.mxu0 0
        %325 = vmatpush1.bf16.msra.mxu0 %v300
        %326 = vmatprep.subr.bf16.mxu0 0
        %327 = vmatpush1.bf16.msra.mxu0 %v299
        %328 = vmatprep.subr.bf16.mxu0 0
        %329 = vmatpush1.bf16.msra.mxu0 %v298
        %330 = vmatprep.subr.bf16.mxu0 0
        %331 = vmatpush1.bf16.msra.mxu0 %v297
        %332 = vmatprep.subr.bf16.mxu0 0
        %333 = vmatpush1.bf16.msra.mxu0 %v296
        %334 = vmatprep.subr.bf16.mxu0 0
        %335 = vmatpush1.bf16.msra.mxu0 %v295
        %336 = vmatprep.subr.bf16.mxu0 0
        %337 = vmatpush2.bf16.msra.mxu0 0
        %338 = vmatprep.subr.bf16.mxu0 0
        %339 = vmatpush2.bf16.msra.mxu0 0
        %340 = vmatprep.subr.bf16.mxu0 0
        %341 = vmatpush2.bf16.msra.mxu0 0
        %342 = vmatprep.subr.bf16.mxu0 0
        %343 = vmatpush2.bf16.msra.mxu0 0
        %344 = vmatprep.subr.bf16.mxu0 0
        %345 = vmatpush2.bf16.msra.mxu0 0
        %346 = vmatprep.subr.bf16.mxu0 0
        %347 = vmatpush2.bf16.msra.mxu0 0
        %348 = vmatprep.subr.bf16.mxu0 0
        %349 = vmatpush2.bf16.msra.mxu0 0
        %350 = vmatprep.subr.bf16.mxu0 0
        %351 = vmatpush2.bf16.msra.mxu0 %v303
        %352 = vmatprep.mubr.bf16.mxu0 %v315
        %353 = vmatmul.mubr.bf16.gmra.mxu0 %v253
        %v354 = vpop.f32.mrf.mxu0
        %v355 = vadd.f32 %v224, %v354
        %v356 = vpop.f32.mrf.mxu0
        %v357 = vpop.f32.mrf.mxu0
        %v358 = vadd.f32 %v229, %v357
        %v359 = vpop.f32.mrf.mxu0
        %360 = vmatprep.mubr.bf16.mxu0 %v318
        %361 = vmatmul.mubr.bf16.gmra.mxu0 %v255
        %v362 = vpop.f32.mrf.mxu0
        %v363 = vadd.f32 %v234, %v362
        %v364 = vpop.f32.mrf.mxu0
        %v365 = vpop.f32.mrf.mxu0
        %v366 = vadd.f32 %v239, %v365
        %v367 = vpop.f32.mrf.mxu0
        %368 = vdwg.mxu0
        %369 = vst [vmem:[%s185] sm:$0xff] %v355
        %370 = vst [vmem:[%s185 + $0x8] sm:$0xff] %v358
        %371 = vst [vmem:[%s185 + $0x10] sm:$0xff] %v363
        %372 = vst [vmem:[%s185 + $0x18] sm:$0xff] %v366
        %s373 = sand.u32 %s109, 1
        %s374 = scalar_lea.sflag [#allocation3], %s373
        %s375 = sand.u32 %s109, 1
        %s376 = smul.addr %s375, 32
        %s377 = scalar_lea.vmem [#allocation2], %s376
        // Predicated region
        $region33: #{tpu_custom_call.1} parent=31 // pred_check
          %p378 = pneg %p119
        $region34: #{tpu_custom_call.1} parent=31 // pred_check_branch
          %380 = sbr.rel (%p378) target = $region36
        $region35: #{tpu_custom_call.1} parent=31 // pred_region
          %s382 = ssub.s32 512, 512
          %383 = vsyncadd %s374, %s382
          %s384 = smul.addr %s21, 4
          %s385 = sadd.s32 %s22, %s384
          %s386 = smul.addr %s385, 128
          %s387 = scalar_lea.hbm %s3, %s386
          %s388 = sshll.u32 %s377, 4
          %s389 = int_to_ptr.vmem [resolvable:$true] %s388
          %394 = dma.vmem_to_hbm [thread:$0]  %s389, 512, %s387, %s374, 128, 128, 8
        $region36: #{tpu_custom_call.1} parent=31 // pred_fallthru
          _
      $region32: #{tpu_custom_call.1} parent=5 // pred_fallthru
        _
      %p395 = scmp.le.s32.totalorder 2, %s12
      // Predicated region
      $region37: #{tpu_custom_call.1} parent=5 // pred_check
        %p396 = pneg %p395
      $region38: #{tpu_custom_call.1} parent=5 // pred_check_branch
        %398 = sbr.rel (%p396) target = $region40
      $region39: #{tpu_custom_call.1} parent=5 // pred_region
        %s399 = ssub.s32 %s12, 2
        // Predicated region
        $region41: #{tpu_custom_call.1} parent=39 // pred_check
          %p400 = pneg %p125
        $region42: #{tpu_custom_call.1} parent=39 // pred_check_branch
          %402 = sbr.rel (%p400) target = $region44
        $region43: #{tpu_custom_call.1} parent=39 // pred_region
          %s403 = sand.u32 %s110, 1
          %s404 = scalar_lea.sflag [#allocation3], %s403
          %s405 = sand.u32 %s110, 1
          %s406 = smul.addr %s405, 32
          %s407 = scalar_lea.vmem [#allocation2], %s406
          %408 = dma.done %s404, 512
        $region44: #{tpu_custom_call.1} parent=39 // pred_fallthru
          _
      $region40: #{tpu_custom_call.1} parent=5 // pred_fallthru
        _
    $region6: #{tpu_custom_call.1} parent=1 // loop_footer
      %s16 = sadd.s32 1, %s12
    $region7: #{tpu_custom_call.1} parent=1 // loop_footer_branch
      %11 = sbr.rel target = $region3
    $region8: #{tpu_custom_call.1} parent=1 // loop_exit
      _
    %409 = vsyncpa [#allocation3], 1
    %s410 = scalar_lea.sflag [#allocation3], 1
    %411 = vsyncpa %s410, 1

</llo_original>
